<compile_context>
chip_gen: v6e
topology: v6e:2x2x1
jax: 0.10.0
libtpu: 0.0.40
codegen_flags: <defaults>
</compile_context>

<pallas_src>
import functools
import numpy as np
import jax
import jax.numpy as jnp
from jax import lax
from jax.experimental import pallas as pl
from jax.experimental.pallas import tpu as pltpu


def _cdiv(a, b):
    return -(-a // b)


def _focal_kernel(x_ref, t_ref, o_ref, *, alpha, gamma, eps, reduce_sum, HW, TM):
    # x_ref: (NB, C, TM) logits tile; t_ref: (NB, 1, TM) int32 labels
    # o_ref: (NB, 1, TM) per-pixel loss  OR  (1, 8, 128) per-batch-block partial sum
    x = x_ref[...].astype(jnp.float32)              # upcast after the (possibly bf16) DMA
    t = t_ref[...]                                  # (NB, 1, TM) int32

    # numerically-stable softmax / log-softmax over the class (sublane) axis
    m = jnp.max(x, axis=1, keepdims=True)           # (NB, 1, TM)
    z = x - m
    ez = jnp.exp(z)
    denom = jnp.sum(ez, axis=1, keepdims=True)      # (NB, 1, TM)
    inv = pl.reciprocal(denom, approx=False)        # one divide per pixel
    p = ez * inv                                    # softmax
    logp = z - jnp.log(denom)                       # log_softmax

    # (1 - p)^gamma : specialize integer gamma (avoids exp∘log power on the EUP)
    one_minus_p = 1.0 - p
    if float(gamma).is_integer() and gamma >= 0:
        gi = int(gamma)
        weight = jnp.ones_like(p) if gi == 0 else lax.integer_pow(one_minus_p, gi)
    else:
        weight = jnp.power(one_minus_p, jnp.float32(gamma))

    # sum_c (onehot_c + eps) * weight_c * logp_c
    #   == wl[target] + eps * sum_c wl_c   with  wl = weight * logp
    # (no explicit one-hot tensor: fewer VALU ops on the (C, TM) tensor, the
    #  extra class-sum is a cheap XLU sublane reduce)
    wl = weight * logp                                              # (NB, C, TM)
    cls = lax.broadcasted_iota(jnp.int32, wl.shape, 1)
    picked = jnp.sum(jnp.where(cls == t, wl, 0.0), axis=1, keepdims=True)
    picked = picked + jnp.float32(eps) * jnp.sum(wl, axis=1, keepdims=True)
    loss = (-jnp.float32(alpha)) * picked                           # (NB, 1, TM)

    if not reduce_sum:
        o_ref[...] = loss
        return

    # 'sum'/'mean': accumulate a per-batch-block partial sum in VMEM (no HBM
    # round trip of the full loss).  Mask the ragged pixel tail before summing
    # so garbage padded columns cannot leak NaN/Inf into the reduction.
    i_blk = pl.program_id(1)
    if HW % TM != 0:
        pix = lax.broadcasted_iota(jnp.int32, loss.shape, 2) + i_blk * TM
        loss = jnp.where(pix < HW, loss, 0.0)
    s = jnp.sum(loss)

    @pl.when(i_blk == 0)
    def _():
        o_ref[...] = jnp.zeros_like(o_ref)
    o_ref[...] += s        # every lane holds the same partial; read [0, 0] outside


def _choose_blocking(N, C, HW, itemsize, reduce_sum, tile_cap=None):
    """Pick (NB, nb_blocks, TM, n_tiles).

    VMEM sizing accounts for BOTH the double-buffered input/output blocks and
    the ~8 live f32 (C, TM) intermediates the kernel materializes (upcast x, z,
    ez, p, logp, weight, wl, where-product), against a 24 MiB budget so the
    footprint stays safely under the 48 MiB scoped-VMEM limit requested in
    CompilerParams (v7x has only 64 MiB physical VMEM per TensorCore)."""
    per_col = 2 * (C * itemsize + 4 + 4) + 8 * C * 4     # bytes per (batch-row, pixel col)
    budget = 24 * 1024 * 1024
    cap = int(max(128, min(budget // per_col, 32768)))
    if tile_cap is not None:
        cap = max(128, min(cap, int(tile_cap)))

    # pixel tile: whole HW if it fits (a full-dim block is always legal), else
    # the largest multiple of 128 under the cap (ragged tail handled by Pallas)
    TM = HW if HW <= cap else max(128, (cap // 128) * 128)
    n_tiles = _cdiv(HW, TM)

    # batch several images per grid step when the pixel tile is small, so each
    # step moves enough bytes to amortize the ~0.35 us per-step overhead
    NB = int(max(1, min(N, cap // max(TM, 1))))
    if reduce_sum:
        while N % NB:            # sum path: exact batch blocks (no row masking needed)
            NB -= 1
    nb_blocks = _cdiv(N, NB)

    # keep >= 2 grid steps when there is enough work so ("parallel", ...) can
    # shard across both TensorCores on v7x
    if nb_blocks * n_tiles < 2 and N * HW >= 2048:
        if NB > 1:
            NB = _cdiv(N, 2)
            if reduce_sum:
                while N % NB:
                    NB -= 1
            nb_blocks = _cdiv(N, NB)
        elif TM == HW and HW >= 256:
            TM = max(128, _cdiv(_cdiv(HW, 2), 128) * 128)
            n_tiles = _cdiv(HW, TM)
    return NB, nb_blocks, TM, n_tiles


def focal_loss_pallas(logits, target, alpha, gamma=2.0, reduction='none', eps=1e-6,
                      _tile_cap=None):
    """logits: (N, C, *spatial) float; target: (N, *spatial) int."""
    if reduction not in ('none', 'mean', 'sum'):
        raise NotImplementedError(f'Invalid reduction mode: {reduction}')
    N = logits.shape[0]
    C = logits.shape[1]
    spatial = logits.shape[2:]
    HW = int(np.prod(spatial)) if spatial else 1

    # natural views — no transpose, no pad, no dtype change of the logits
    x = logits.reshape(N, C, HW)
    t = target.reshape(N, 1, HW).astype(jnp.int32)

    itemsize = jnp.dtype(x.dtype).itemsize
    reduce_sum = reduction in ('mean', 'sum')
    NB, nb_blocks, TM, n_tiles = _choose_blocking(N, C, HW, itemsize, reduce_sum, _tile_cap)

    kernel = functools.partial(
        _focal_kernel, alpha=float(alpha), gamma=float(gamma), eps=float(eps),
        reduce_sum=reduce_sum, HW=HW, TM=TM)

    M = N * HW
    trans = (C + 2) * M + (0 if float(gamma).is_integer() else 2 * C * M)
    out_bytes = nb_blocks * 8 * 128 * 4 if reduce_sum else 4 * M
    cost = pl.CostEstimate(flops=10 * C * M, transcendentals=trans,
                           bytes_accessed=itemsize * C * M + 4 * M + out_bytes)

    in_specs = [
        pl.BlockSpec((NB, C, TM), lambda n, i: (n, 0, i)),
        pl.BlockSpec((NB, 1, TM), lambda n, i: (n, 0, i)),
    ]
    if reduce_sum:
        out_shape = jax.ShapeDtypeStruct((nb_blocks, 8, 128), jnp.float32)
        out_specs = pl.BlockSpec((1, 8, 128), lambda n, i: (n, 0, 0))
        dims = ("parallel", "arbitrary")     # pixel axis accumulates into resident block
    else:
        out_shape = jax.ShapeDtypeStruct((N, 1, HW), jnp.float32)
        out_specs = pl.BlockSpec((NB, 1, TM), lambda n, i: (n, 0, i))
        dims = ("parallel", "parallel")

    out = pl.pallas_call(
        kernel,
        out_shape=out_shape,
        grid_spec=pltpu.PrefetchScalarGridSpec(
            num_scalar_prefetch=0,
            grid=(nb_blocks, n_tiles),
            in_specs=in_specs,
            out_specs=out_specs,
        ),
        compiler_params=pltpu.CompilerParams(
            dimension_semantics=dims,
            vmem_limit_bytes=48 * 1024 * 1024),
        cost_estimate=cost,
    )(x, t)

    if not reduce_sum:
        return out.reshape((N,) + spatial)
    total = jnp.sum(out[:, 0, 0])            # tiny: one f32 partial per batch block
    if reduction == 'sum':
        return total
    return total / jnp.float32(M)            # 'mean'


class FocalLoss:
    """JAX/Pallas equivalent of the PyTorch FocalLoss module (forward only)."""

    def __init__(self, alpha, gamma=2.0, reduction='none', eps=None):
        # `eps` argument of the torch module is deprecated / unused; the 1e-6
        # one-hot epsilon is fixed inside the kernel to match `one_hot`.
        self.alpha = alpha
        self.gamma = gamma
        self.reduction = reduction
        self.eps = eps

    def __call__(self, logits, target):
        return focal_loss_pallas(logits, target, self.alpha, self.gamma, self.reduction)


def _reference_focal_loss(logits, target, alpha, gamma, reduction):
    # pure-JAX reference mirroring the torch code, for sanity checks
    C = logits.shape[1]
    lg = logits.astype(jnp.float32)
    p = jax.nn.softmax(lg, axis=1)
    logp = jax.nn.log_softmax(lg, axis=1)
    oh = jnp.moveaxis(jax.nn.one_hot(target, C, dtype=jnp.float32), -1, 1) + 1e-6
    focal = -alpha * jnp.power(1.0 - p, gamma) * logp
    loss = jnp.sum(oh * focal, axis=1)
    if reduction == 'mean':
        return jnp.mean(loss)
    if reduction == 'sum':
        return jnp.sum(loss)
    return loss


if __name__ == "__main__":
    key = jax.random.PRNGKey(0)
    k1, k2, k3, k4 = jax.random.split(key, 4)

    # primary small case (N, C, H, W) = (2, 4, 16, 16) — single batched block
    N, C, H, W = 2, 4, 16, 16
    logits = jax.random.normal(k1, (N, C, H, W), dtype=jnp.float32)
    target = jax.random.randint(k2, (N, H, W), 0, C, dtype=jnp.int32)

    out = jax.block_until_ready(FocalLoss(alpha=0.5, gamma=2.0, reduction='none')(logits, target))
    ref = _reference_focal_loss(logits, target, 0.5, 2.0, 'none')
    np.testing.assert_allclose(np.asarray(out), np.asarray(ref), rtol=1e-5, atol=1e-5)

    # 'mean' reduction — exercises the in-kernel partial-sum accumulation path
    mean_loss = jax.block_until_ready(
        FocalLoss(alpha=0.5, gamma=2.0, reduction='mean')(logits, target))
    np.testing.assert_allclose(
        np.asarray(mean_loss),
        np.asarray(_reference_focal_loss(logits, target, 0.5, 2.0, 'mean')),
        rtol=1e-5, atol=1e-5)

    # bf16 logits, non-integer gamma, 'sum' — generic power + full-HW tile split
    # across two grid steps
    H2, W2 = 70, 70
    logits2 = jax.random.normal(k3, (N, C, H2, W2), dtype=jnp.bfloat16)
    target2 = jax.random.randint(k4, (N, H2, W2), 0, C, dtype=jnp.int32)
    out2 = jax.block_until_ready(
        FocalLoss(alpha=0.25, gamma=1.5, reduction='sum')(logits2, target2))
    ref2 = _reference_focal_loss(logits2, target2, 0.25, 1.5, 'sum')
    np.testing.assert_allclose(np.asarray(out2), np.asarray(ref2), rtol=2e-2, atol=2e-2)

    # forced multi-tile + ragged pixel tail (tile cap 1024 over HW=4900) for both
    # the 'none' writeback-clip path and the masked in-kernel sum path
    logits3 = logits2.astype(jnp.float32)
    out3 = jax.block_until_ready(
        focal_loss_pallas(logits3, target2, 0.5, 2.0, 'none', _tile_cap=1024))
    ref3 = _reference_focal_loss(logits3, target2, 0.5, 2.0, 'none')
    np.testing.assert_allclose(np.asarray(out3), np.asarray(ref3), rtol=1e-5, atol=1e-5)

    mean3 = jax.block_until_ready(
        focal_loss_pallas(logits3, target2, 0.5, 2.0, 'mean', _tile_cap=1024))
    ref3m = _reference_focal_loss(logits3, target2, 0.5, 2.0, 'mean')
    np.testing.assert_allclose(np.asarray(mean3), np.asarray(ref3m), rtol=1e-5, atol=1e-6)

    print("KERNEL_OK")
</pallas_src>

<mosaic_0001>
module attributes {stable_mosaic.version = 11 : i64} {
  func.func @_focal_kernel(%arg0: i32, %arg1: i32, %arg2: memref<2x4x256xf32, #tpu.memory_space<vmem>>, %arg3: memref<2x1x256xi32, #tpu.memory_space<vmem>>, %arg4: memref<2x1x256xf32, #tpu.memory_space<vmem>>) attributes {dimension_semantics = [#tpu.dimension_semantics<parallel>, #tpu.dimension_semantics<parallel>], iteration_bounds = array<i64: 1, 1>, scalar_prefetch = 0 : i64, scratch_operands = 0 : i64, tpu.core_type = #tpu.core_type<tc>, window_params = [{transform_indices = @transform_0, window_bounds = array<i64: 2, 4, 256>}, {transform_indices = @transform_1, window_bounds = array<i64: 2, 1, 256>}, {transform_indices = @transform_2, window_bounds = array<i64: 2, 1, 256>}]} {
    %c0 = arith.constant 0 : index
    %c0_0 = arith.constant 0 : index
    %c0_1 = arith.constant 0 : index
    %0 = vector.load %arg2[%c0, %c0_0, %c0_1] : memref<2x4x256xf32, #tpu.memory_space<vmem>>, vector<2x4x256xf32>
    %c0_2 = arith.constant 0 : index
    %c0_3 = arith.constant 0 : index
    %c0_4 = arith.constant 0 : index
    %1 = vector.load %arg3[%c0_2, %c0_3, %c0_4] : memref<2x1x256xi32, #tpu.memory_space<vmem>>, vector<2x1x256xi32>
    %cst = arith.constant dense<0xFF800000> : vector<2x256xf32>
    %2 = vector.multi_reduction <maximumf>, %0, %cst [1] : vector<2x4x256xf32> to vector<2x256xf32>
    %3 = vector.shape_cast %2 : vector<2x256xf32> to vector<2x1x256xf32>
    %4 = vector.broadcast %3 : vector<2x1x256xf32> to vector<2x4x256xf32>
    %5 = arith.subf %0, %4 : vector<2x4x256xf32>
    %6 = math.exp %5 : vector<2x4x256xf32>
    %cst_5 = arith.constant dense<0.000000e+00> : vector<2x256xf32>
    %7 = vector.multi_reduction <add>, %6, %cst_5 [1] : vector<2x4x256xf32> to vector<2x256xf32>
    %8 = vector.shape_cast %7 : vector<2x256xf32> to vector<2x1x256xf32>
    %9 = tpu.reciprocal %8 : vector<2x1x256xf32> -> vector<2x1x256xf32>
    %10 = vector.broadcast %9 : vector<2x1x256xf32> to vector<2x4x256xf32>
    %11 = arith.mulf %6, %10 : vector<2x4x256xf32>
    %12 = math.log %8 : vector<2x1x256xf32>
    %13 = vector.broadcast %12 : vector<2x1x256xf32> to vector<2x4x256xf32>
    %14 = arith.subf %5, %13 : vector<2x4x256xf32>
    %cst_6 = arith.constant 1.000000e+00 : f32
    %15 = vector.broadcast %cst_6 : f32 to vector<2x4x256xf32>
    %16 = arith.subf %15, %11 : vector<2x4x256xf32>
    %17 = arith.mulf %16, %16 : vector<2x4x256xf32>
    %18 = arith.mulf %17, %14 : vector<2x4x256xf32>
    %19 = tpu.iota {dimensions = array<i32: 1>} : vector<2x4x256xi32>
    %20 = vector.broadcast %1 : vector<2x1x256xi32> to vector<2x4x256xi32>
    %21 = arith.cmpi eq, %19, %20 : vector<2x4x256xi32>
    %cst_7 = arith.constant 0.000000e+00 : f32
    %22 = vector.broadcast %cst_7 : f32 to vector<2x4x256xf32>
    %23 = arith.select %21, %18, %22 : vector<2x4x256xi1>, vector<2x4x256xf32>
    %cst_8 = arith.constant dense<0.000000e+00> : vector<2x256xf32>
    %24 = vector.multi_reduction <add>, %23, %cst_8 [1] : vector<2x4x256xf32> to vector<2x256xf32>
    %25 = vector.shape_cast %24 : vector<2x256xf32> to vector<2x1x256xf32>
    %cst_9 = arith.constant dense<0.000000e+00> : vector<2x256xf32>
    %26 = vector.multi_reduction <add>, %18, %cst_9 [1] : vector<2x4x256xf32> to vector<2x256xf32>
    %27 = vector.shape_cast %26 : vector<2x256xf32> to vector<2x1x256xf32>
    %cst_10 = arith.constant 9.99999997E-7 : f32
    %28 = vector.broadcast %cst_10 : f32 to vector<2x1x256xf32>
    %29 = arith.mulf %28, %27 : vector<2x1x256xf32>
    %30 = arith.addf %25, %29 : vector<2x1x256xf32>
    %cst_11 = arith.constant 0.000000e+00 : f32
    %cst_12 = arith.constant 5.000000e-01 : f32
    %31 = arith.subf %cst_11, %cst_12 : f32
    %32 = vector.broadcast %31 : f32 to vector<2x1x256xf32>
    %33 = arith.mulf %32, %30 : vector<2x1x256xf32>
    %c0_13 = arith.constant 0 : index
    %c0_14 = arith.constant 0 : index
    %c0_15 = arith.constant 0 : index
    %34 = vector.load %arg4[%c0_13, %c0_14, %c0_15] : memref<2x1x256xf32, #tpu.memory_space<vmem>>, vector<2x1x256xf32>
    tpu.vector_store %arg4[%c0_13, %c0_14, %c0_15], %33 {strides = array<i32>} : memref<2x1x256xf32, #tpu.memory_space<vmem>>, vector<2x1x256xf32>,
    return
  }
  func.func @transform_0(%arg0: i32, %arg1: i32) -> (i32, i32, i32) {
    %c0_i32 = arith.constant 0 : i32
    %c0_i32_0 = arith.constant 0 : i32
    return %arg0, %c0_i32, %arg1 : i32, i32, i32
  }
  func.func @transform_1(%arg0: i32, %arg1: i32) -> (i32, i32, i32) {
    %c0_i32 = arith.constant 0 : i32
    %c0_i32_0 = arith.constant 0 : i32
    return %arg0, %c0_i32, %arg1 : i32, i32, i32
  }
  func.func @transform_2(%arg0: i32, %arg1: i32) -> (i32, i32, i32) {
    %c0_i32 = arith.constant 0 : i32
    %c0_i32_0 = arith.constant 0 : i32
    return %arg0, %c0_i32, %arg1 : i32, i32, i32
  }
}

</mosaic_0001>

<llo_original>
// kernel: tpu_custom_call.1
$region0: #{tpu_custom_call.1}
  #allocation0 [shape = 'u32[]', space=smem, size = 0x4, offset = 0x4, fixed_abs, tag = 'smem constant byte address 0x4 - core index']
  #allocation1 [shape = 'u32[144,128]{1,0:T(1,128)}', space=vmem, size = 0x12000, scoped, tag = 'internal scratch']
  %s0 = inlined_call_operand.hbm [shape: f32[2,4,256], index: 0, kind: input, shape index: {}]
  %s1 = inlined_call_operand.hbm [shape: s32[2,1,256], index: 1, kind: input, shape index: {}]
  %s2 = inlined_call_operand.hbm [shape: f32[2,1,256], index: 2, kind: output, shape index: {}]
  %s3 = sld [smem:[#allocation0]]
  $region26: #{tpu_custom_call.1} parent=0
    _
  %s5 = ssub.s32 1, %s3
  %s6 = scalar_select 0, %s5, %s3
  $region1: #{tpu_custom_call.1} parent=0
    #allocation2 [shape = 'u8[8192]{0}', space=vmem, size = 0x2000, scoped, tag = 'input window, operand 0, single buffered']
    #allocation3 [shape = 's32[1]{0}', space=sflag, size = 0x4, scoped, tag = 'scoped memory for tpu_custom_call.1']
    #allocation4 [shape = 's32[1]{0}', space=sflag, size = 0x4, scoped, tag = 'scoped memory for tpu_custom_call.1']
    #allocation5 [shape = 'u8[2048]{0}', space=vmem, size = 0x800, scoped, tag = 'input window, operand 1, single buffered']
    #allocation6 [shape = 's32[1]{0}', space=sflag, size = 0x4, scoped, tag = 'scoped memory for tpu_custom_call.1']
    #allocation7 [shape = 'u8[2048]{0}', space=vmem, size = 0x800, scoped, tag = 'output window, operand 0, single buffered']
    %7 = vsyncpa [#allocation3], 0
    %8 = vsyncpa [#allocation6], 0
    %9 = vsyncpa [#allocation4], 0
    // Predicated region
    $region2: #{tpu_custom_call.1} parent=1 // pred_check
      _
    $region3: #{tpu_custom_call.1} parent=1 // pred_check_branch
      %11 = sbr.rel (0) target = $region5
    $region4: #{tpu_custom_call.1} parent=1 // pred_region
      %s13 = ssub.s32 256, 256
      %14 = vsyncadd [#allocation3], %s13
      %s15 = sshll.u32 [#allocation2], 4
      %s16 = int_to_ptr.vmem [resolvable:$true] %s15
      %21 = dma.hbm_to_vmem [thread:$0]  %s0, 256, %s16, [#allocation3], 128, 128, 8
    $region5: #{tpu_custom_call.1} parent=1 // pred_fallthru
      _
    // Predicated region
    $region6: #{tpu_custom_call.1} parent=1 // pred_check
      _
    $region7: #{tpu_custom_call.1} parent=1 // pred_check_branch
      %23 = sbr.rel (0) target = $region9
    $region8: #{tpu_custom_call.1} parent=1 // pred_region
      %s25 = ssub.s32 64, 64
      %26 = vsyncadd [#allocation6], %s25
      %s27 = sshll.u32 [#allocation5], 4
      %s28 = int_to_ptr.vmem [resolvable:$true] %s27
      %33 = dma.hbm_to_vmem [thread:$0]  %s1, 64, %s28, [#allocation6], 32, 32, 2
    $region9: #{tpu_custom_call.1} parent=1 // pred_fallthru
      _
    // Predicated region
    $region10: #{tpu_custom_call.1} parent=1 // pred_check
      _
    $region11: #{tpu_custom_call.1} parent=1 // pred_check_branch
      %35 = sbr.rel (0) target = $region13
    $region12: #{tpu_custom_call.1} parent=1 // pred_region
      %36 = dma.done [#allocation3], 256
    $region13: #{tpu_custom_call.1} parent=1 // pred_fallthru
      _
    // Predicated region
    $region14: #{tpu_custom_call.1} parent=1 // pred_check
      _
    $region15: #{tpu_custom_call.1} parent=1 // pred_check_branch
      %38 = sbr.rel (0) target = $region17
    $region16: #{tpu_custom_call.1} parent=1 // pred_region
      %39 = dma.done [#allocation6], 64
    $region17: #{tpu_custom_call.1} parent=1 // pred_fallthru
      _
    %v40 = vld [vmem:[#allocation2] sm:$0xff]
    %v41 = vld [vmem:[#allocation2 + $0x8] sm:$0xff]
    %v42 = vld [vmem:[#allocation5] sm:$0x3]
    %v43 = vld [vmem:[#allocation5 + $0x2] sm:$0x3]
    %v46 = vcombine.high %v40, %v40
    %v47 = vcombine.high %v41, %v41
    %vm50 = vcmask 1043456
    %v51 = vsel %vm50, %v40, -inf
    %v52 = vrot.slane %v51, 4
    %v53 = vmax.f32 %v51, %v52
    %v54 = vrot.slane %v53, 2
    %v55 = vmax.f32 %v53, %v54
    %v56 = vrot.slane %v55, 1
    %v57 = vmax.f32 %v55, %v56
    %v58 = vsel %vm50, %v46, -inf
    %v59 = vrot.slane %v58, 4
    %v60 = vmax.f32 %v58, %v59
    %v61 = vrot.slane %v60, 2
    %v62 = vmax.f32 %v60, %v61
    %v63 = vrot.slane %v62, 1
    %v64 = vmax.f32 %v62, %v63
    %v65 = vsel %vm50, %v41, -inf
    %v66 = vrot.slane %v65, 4
    %v67 = vmax.f32 %v65, %v66
    %v68 = vrot.slane %v67, 2
    %v69 = vmax.f32 %v67, %v68
    %v70 = vrot.slane %v69, 1
    %v71 = vmax.f32 %v69, %v70
    %v72 = vsel %vm50, %v47, -inf
    %v73 = vrot.slane %v72, 4
    %v74 = vmax.f32 %v72, %v73
    %v75 = vrot.slane %v74, 2
    %v76 = vmax.f32 %v74, %v75
    %v77 = vrot.slane %v76, 1
    %v78 = vmax.f32 %v76, %v77
    %v83 = vcombine.low %v57, %v64
    %v84 = vcombine.low %v71, %v78
    %v87 = vsub.f32 %v40, %v83
    %v88 = vsub.f32 %v41, %v84
    %v89 = vmul.f32 %v87, 1.442695
    %v90 = vpow.pop %v89
    %v91 = vmul.f32 %v88, 1.442695
    %v92 = vpow.pop %v91
    %v95 = vcombine.high %v90, %v90
    %v96 = vcombine.high %v92, %v92
    %v99 = vsel %vm50, %v90, 0.0
    %v100 = vrot.slane %v99, 4
    %v101 = vadd.f32 %v99, %v100
    %v102 = vrot.slane %v101, 2
    %v103 = vadd.f32 %v101, %v102
    %v104 = vrot.slane %v103, 1
    %v105 = vadd.f32 %v103, %v104
    %v106 = vsel %vm50, %v95, 0.0
    %v107 = vrot.slane %v106, 4
    %v108 = vadd.f32 %v106, %v107
    %v109 = vrot.slane %v108, 2
    %v110 = vadd.f32 %v108, %v109
    %v111 = vrot.slane %v110, 1
    %v112 = vadd.f32 %v110, %v111
    %v113 = vsel %vm50, %v92, 0.0
    %v114 = vrot.slane %v113, 4
    %v115 = vadd.f32 %v113, %v114
    %v116 = vrot.slane %v115, 2
    %v117 = vadd.f32 %v115, %v116
    %v118 = vrot.slane %v117, 1
    %v119 = vadd.f32 %v117, %v118
    %v120 = vsel %vm50, %v96, 0.0
    %v121 = vrot.slane %v120, 4
    %v122 = vadd.f32 %v120, %v121
    %v123 = vrot.slane %v122, 2
    %v124 = vadd.f32 %v122, %v123
    %v125 = vrot.slane %v124, 1
    %v126 = vadd.f32 %v124, %v125
    %v127 = vrcp.pop %v105
    %v128 = vrcp.pop %v112
    %v129 = vrcp.pop %v119
    %v130 = vrcp.pop %v126
    %v135 = vcombine.low %v127, %v128
    %v136 = vcombine.low %v129, %v130
    %v139 = vmul.f32 %v90, %v135
    %v140 = vmul.f32 %v92, %v136
    %v141 = vlog2.pop %v105
    %v142 = vmul.f32 %v141, 0.6931472
    %v143 = vlog2.pop %v112
    %v144 = vmul.f32 %v143, 0.6931472
    %v145 = vlog2.pop %v119
    %v146 = vmul.f32 %v145, 0.6931472
    %v147 = vlog2.pop %v126
    %v148 = vmul.f32 %v147, 0.6931472
    %v153 = vcombine.low %v142, %v144
    %v154 = vcombine.low %v146, %v148
    %v157 = vsub.f32 %v87, %v153
    %v158 = vsub.f32 %v88, %v154
    %v159 = vsub.f32 1.0, %v139
    %v160 = vsub.f32 1.0, %v140
    %v161 = vmul.f32 %v159, %v159
    %v162 = vmul.f32 %v160, %v160
    %v163 = vmul.f32 %v161, %v157
    %v164 = vmul.f32 %v162, %v158
    %v165 = vlaneseq
    %v166 = vshrl.u32 %v165, 7
    %v167 = vlaneseq
    %v168 = vshrl.u32 %v167, 7
    %v169 = vsub.s32 0, %v168
    %v170 = vrot.slane %v42, %v169
    %v171 = vlaneseq
    %v172 = vshrl.u32 %v171, 7
    %v173 = vsub.s32 1, %v172
    %v174 = vrot.slane %v42, %v173
    %v175 = vlaneseq
    %v176 = vshrl.u32 %v175, 7
    %v177 = vsub.s32 0, %v176
    %v178 = vrot.slane %v43, %v177
    %v179 = vlaneseq
    %v180 = vshrl.u32 %v179, 7
    %v181 = vsub.s32 1, %v180
    %v182 = vrot.slane %v43, %v181
    %vm183 = vcmp.eq.s32.totalorder %v166, %v170
    %vm184 = vcmp.eq.s32.totalorder %v166, %v174
    %vm185 = vcmp.eq.s32.totalorder %v166, %v178
    %vm186 = vcmp.eq.s32.totalorder %v166, %v182
    %v189 = vcombine.high %v163, %v163
    %v190 = vcombine.high %v164, %v164
    %v193 = vsel %vm183, %v163, 0.0
    %v194 = vsel %vm184, %v189, 0.0
    %v195 = vsel %vm185, %v164, 0.0
    %v196 = vsel %vm186, %v190, 0.0
    %v197 = vsel %vm50, %v193, 0.0
    %v198 = vrot.slane %v197, 4
    %v199 = vadd.f32 %v197, %v198
    %v200 = vrot.slane %v199, 2
    %v201 = vadd.f32 %v199, %v200
    %v202 = vrot.slane %v201, 1
    %v203 = vadd.f32 %v201, %v202
    %v204 = vsel %vm50, %v194, 0.0
    %v205 = vrot.slane %v204, 4
    %v206 = vadd.f32 %v204, %v205
    %v207 = vrot.slane %v206, 2
    %v208 = vadd.f32 %v206, %v207
    %v209 = vrot.slane %v208, 1
    %v210 = vadd.f32 %v208, %v209
    %v211 = vsel %vm50, %v195, 0.0
    %v212 = vrot.slane %v211, 4
    %v213 = vadd.f32 %v211, %v212
    %v214 = vrot.slane %v213, 2
    %v215 = vadd.f32 %v213, %v214
    %v216 = vrot.slane %v215, 1
    %v217 = vadd.f32 %v215, %v216
    %v218 = vsel %vm50, %v196, 0.0
    %v219 = vrot.slane %v218, 4
    %v220 = vadd.f32 %v218, %v219
    %v221 = vrot.slane %v220, 2
    %v222 = vadd.f32 %v220, %v221
    %v223 = vrot.slane %v222, 1
    %v224 = vadd.f32 %v222, %v223
    %v225 = vsel %vm50, %v163, 0.0
    %v226 = vrot.slane %v225, 4
    %v227 = vadd.f32 %v225, %v226
    %v228 = vrot.slane %v227, 2
    %v229 = vadd.f32 %v227, %v228
    %v230 = vrot.slane %v229, 1
    %v231 = vadd.f32 %v229, %v230
    %v232 = vsel %vm50, %v189, 0.0
    %v233 = vrot.slane %v232, 4
    %v234 = vadd.f32 %v232, %v233
    %v235 = vrot.slane %v234, 2
    %v236 = vadd.f32 %v234, %v235
    %v237 = vrot.slane %v236, 1
    %v238 = vadd.f32 %v236, %v237
    %v239 = vsel %vm50, %v164, 0.0
    %v240 = vrot.slane %v239, 4
    %v241 = vadd.f32 %v239, %v240
    %v242 = vrot.slane %v241, 2
    %v243 = vadd.f32 %v241, %v242
    %v244 = vrot.slane %v243, 1
    %v245 = vadd.f32 %v243, %v244
    %v246 = vsel %vm50, %v190, 0.0
    %v247 = vrot.slane %v246, 4
    %v248 = vadd.f32 %v246, %v247
    %v249 = vrot.slane %v248, 2
    %v250 = vadd.f32 %v248, %v249
    %v251 = vrot.slane %v250, 1
    %v252 = vadd.f32 %v250, %v251
    %v253 = vmul.f32 %v231, 1e-06
    %v254 = vmul.f32 %v238, 1e-06
    %v255 = vmul.f32 %v245, 1e-06
    %v256 = vmul.f32 %v252, 1e-06
    %v257 = vadd.f32 %v203, %v253
    %v258 = vadd.f32 %v210, %v254
    %v259 = vadd.f32 %v217, %v255
    %v260 = vadd.f32 %v224, %v256
    %v261 = vmul.f32 %v257, -0.5
    %v262 = vmul.f32 %v258, -0.5
    %v263 = vmul.f32 %v259, -0.5
    %v264 = vmul.f32 %v260, -0.5
    %v269 = vcombine.low %v261, %v262
    %v271 = vunpack.c.l.s4 1966171168
    %v272 = vunpack.c.0.s8 %v271
    %v273 = vlaneseq
    %v274 = vshrl.u32 %v273, 7
    %v275 = vsub.s32 %v272, %v274
    %v276 = vrot.slane %v269, %v275
    %v278 = vunpack.c.l.s4 1966171168
    %v279 = vunpack.c.0.s8 %v278
    %v280 = vlaneseq
    %v281 = vshrl.u32 %v280, 7
    %v282 = vsub.s32 %v279, %v281
    %v283 = vrot.slane %v276, %v282
    %v284 = vcombine.low %v263, %v264
    %v286 = vunpack.c.l.s4 1966171168
    %v287 = vunpack.c.0.s8 %v286
    %v288 = vlaneseq
    %v289 = vshrl.u32 %v288, 7
    %v290 = vsub.s32 %v287, %v289
    %v291 = vrot.slane %v284, %v290
    %v293 = vunpack.c.l.s4 1966171168
    %v294 = vunpack.c.0.s8 %v293
    %v295 = vlaneseq
    %v296 = vshrl.u32 %v295, 7
    %v297 = vsub.s32 %v294, %v296
    %v298 = vrot.slane %v291, %v297
    %v301 = vlaneseq
    %vm302 = vcmp.ge.s32.totalorder %v301, 0
    %vm303 = vcmp.lt.s32.totalorder %v301, 256
    %vm304 = vmand %vm302, %vm303
    %305 = vst.msk [vmem:[#allocation7] sm:$0x3] %vm304, %v283
    %306 = vst.msk [vmem:[#allocation7 + $0x2] sm:$0x3] %vm304, %v298
    // Predicated region
    $region18: #{tpu_custom_call.1} parent=1 // pred_check
      _
    $region19: #{tpu_custom_call.1} parent=1 // pred_check_branch
      %308 = sbr.rel (0) target = $region21
    $region20: #{tpu_custom_call.1} parent=1 // pred_region
      %s310 = ssub.s32 64, 64
      %311 = vsyncadd [#allocation4], %s310
      %s312 = sshll.u32 [#allocation7], 4
      %s313 = int_to_ptr.vmem [resolvable:$true] %s312
      %318 = dma.vmem_to_hbm [thread:$0]  %s313, 64, %s2, [#allocation4], 32, 32, 2
    $region21: #{tpu_custom_call.1} parent=1 // pred_fallthru
      _
    // Predicated region
    $region22: #{tpu_custom_call.1} parent=1 // pred_check
      _
    $region23: #{tpu_custom_call.1} parent=1 // pred_check_branch
      %320 = sbr.rel (0) target = $region25
    $region24: #{tpu_custom_call.1} parent=1 // pred_region
      %321 = dma.done [#allocation4], 64
    $region25: #{tpu_custom_call.1} parent=1 // pred_fallthru
      _
    %322 = vsyncpa [#allocation3], 1
    %323 = vsyncpa [#allocation6], 1
    %324 = vsyncpa [#allocation4], 1

</llo_original>
